<compile_context>
chip_gen: v7x
topology: tpu7x:2x2x1
jax: 0.10.0
libtpu: 0.0.40
codegen_flags: <defaults>
</compile_context>

<pallas_src>
import functools
import math

import jax
import jax.numpy as jnp
from jax.experimental import pallas as pl
from jax.experimental.pallas import tpu as pltpu


def _xlogy(a: float) -> float:
    """Trace-time xlogy(a, a) with the KLDiv convention 0*log(0) == 0."""
    return a * math.log(a) if a > 0.0 else 0.0


def _label_smoothing_kernel(x_ref, tgt_ref, loss_ref, acc_ref, *,
                            padding_idx, confidence, base, c_per_elem):
    i = pl.program_id(0)

    @pl.when(i == 0)
    def _():
        acc_ref[...] = jnp.zeros_like(acc_ref)

    x = x_ref[...].astype(jnp.float32)          # (tm, V) log-probs
    tgt = tgt_ref[...]                          # (tm, 1) int32 target per row
    tm, V = x.shape

    col = jax.lax.broadcasted_iota(jnp.int32, (tm, V), 1)

    # w == true_dist for valid rows (confidence at target col, 0 at padding col,
    # smoothing/(size-2) elsewhere).  Rows with target == padding_idx are zeroed
    # by the `valid` mask below.
    w = jnp.where(col == tgt, jnp.float32(confidence), jnp.float32(base))
    w = jnp.where(col == padding_idx, jnp.float32(0.0), w)

    valid = (tgt != padding_idx).astype(jnp.float32)            # (tm, 1)

    # Per valid row:  sum_j td*log(td) - td*x  ==  C - sum_j w*x.
    # Distribute the trace-time constant C as C/V per element so the whole tile
    # reduces with plain adds (no per-row constant bookkeeping).
    terms = valid * (jnp.float32(c_per_elem) - w * x)           # (tm, V)

    # Deferred reduction: fold the (tm, V) tile into the persistent (8, V)
    # accumulator with pure VPU vreg adds (rows r*8:(r+1)*8 are whole vregs).
    partial = acc_ref[...]
    for r in range(tm // 8):
        partial = partial + terms[r * 8:(r + 1) * 8, :]
    acc_ref[...] = partial

    @pl.when(i == pl.num_programs(0) - 1)
    def _():
        row = jnp.sum(acc_ref[...], axis=0, keepdims=True)      # (1, V)
        loss_ref[...] = jnp.sum(row, axis=1, keepdims=True)     # (1, 1)


def _choose_tm(n_rows, vocab, itemsize, budget_bytes=4 << 20):
    """Largest multiple-of-8 row tile whose x tile stays within `budget_bytes`.

    4 MiB per tile -> 8 MiB double-buffered, comfortably inside the scoped-VMEM
    defaults on v5e (16 MiB), v6e (32 MiB) and v7x (32 MiB scoped / 64 MiB phys).
    """
    rows = (budget_bytes // max(1, vocab * itemsize)) // 8 * 8
    rows = max(8, rows)
    n_rounded = ((n_rows + 7) // 8) * 8
    return min(rows, n_rounded)


def label_smoothing_loss(x, target, *, size, padding_idx, smoothing, tm=None):
    """Pallas implementation of LabelSmoothing.forward (returns scalar loss)."""
    N, V = x.shape
    assert V == size, "x.shape[1] must equal size"

    confidence = 1.0 - smoothing
    base = smoothing / (size - 2)
    # sum_j xlogy(td, td) over one valid row (trace-time constant).
    row_const = _xlogy(confidence) + (size - 2) * _xlogy(base)
    c_per_elem = row_const / size

    itemsize = jnp.dtype(x.dtype).itemsize
    if tm is None:
        tm = _choose_tm(N, V, itemsize)
    assert tm % 8 == 0

    # Pad N up to a multiple of tm.  Padded rows use target == padding_idx and
    # x == 0, which contribute exactly 0 to the loss.
    n_pad = ((N + tm - 1) // tm) * tm
    if n_pad != N:
        x = jnp.pad(x, ((0, n_pad - N), (0, 0)))
        target = jnp.pad(target, (0, n_pad - N), constant_values=padding_idx)

    tgt2d = target.astype(jnp.int32).reshape(n_pad, 1)

    kernel = functools.partial(
        _label_smoothing_kernel,
        padding_idx=padding_idx,
        confidence=confidence,
        base=base,
        c_per_elem=c_per_elem)

    out = pl.pallas_call(
        kernel,
        out_shape=jax.ShapeDtypeStruct((1, 1), jnp.float32),
        grid_spec=pltpu.PrefetchScalarGridSpec(
            num_scalar_prefetch=0,
            grid=(n_pad // tm,),
            in_specs=[
                pl.BlockSpec((tm, V), lambda i: (i, 0)),   # x row tile (native dtype)
                pl.BlockSpec((tm, 1), lambda i: (i, 0)),   # target row tile
            ],
            out_specs=pl.BlockSpec((1, 1), lambda i: (0, 0)),
            scratch_shapes=[pltpu.VMEM((8, V), jnp.float32)],   # lane-dense accumulator
        ),
        compiler_params=pltpu.CompilerParams(
            dimension_semantics=("arbitrary",)),   # reduction over row tiles
        # TODO(synk): on v7x, split the row axis over the 2 TensorCores with a
        # leading "parallel" grid axis emitting two partial sums for ~2x.
    )(x, tgt2d)

    return out[0, 0]


def _reference_loss(x, target, *, size, padding_idx, smoothing):
    N, V = x.shape
    confidence = 1.0 - smoothing
    base = smoothing / (size - 2)
    td = jnp.full((N, V), base, dtype=jnp.float32)
    td = td.at[jnp.arange(N), target].set(confidence)
    td = td.at[:, padding_idx].set(0.0)
    td = jnp.where((target == padding_idx)[:, None], 0.0, td)
    terms = jnp.where(td > 0,
                      td * (jnp.log(jnp.where(td > 0, td, 1.0)) - x),
                      0.0)
    return jnp.sum(terms)


if __name__ == "__main__":
    # LabelSmoothing(size=32, padding_idx=0, smoothing=0.1)
    SIZE = 32
    PADDING_IDX = 0
    SMOOTHING = 0.1
    N = 16  # number of tokens / rows

    key = jax.random.PRNGKey(0)
    k_x, k_t = jax.random.split(key)

    logits = jax.random.normal(k_x, (N, SIZE), dtype=jnp.float32)
    x = jax.nn.log_softmax(logits, axis=-1)          # KLDivLoss expects log-probs
    target = jax.random.randint(k_t, (N,), 1, SIZE, dtype=jnp.int32)
    target = target.at[3].set(PADDING_IDX)           # exercise padding-row masking
    target = target.at[11].set(PADDING_IDX)

    loss = label_smoothing_loss(
        x, target, size=SIZE, padding_idx=PADDING_IDX, smoothing=SMOOTHING)
    loss = jax.block_until_ready(loss)

    ref = _reference_loss(
        x, target, size=SIZE, padding_idx=PADDING_IDX, smoothing=SMOOTHING)
    assert jnp.allclose(loss, ref, rtol=1e-5, atol=1e-5), (loss, ref)

    print("KERNEL_OK")
</pallas_src>

<mosaic_0001>
module attributes {stable_mosaic.version = 11 : i64} {
  func.func @_label_smoothing_kernel(%arg0: i32, %arg1: memref<16x32xf32, #tpu.memory_space<vmem>>, %arg2: memref<16x1xi32, #tpu.memory_space<vmem>>, %arg3: memref<1x1xf32, #tpu.memory_space<vmem>>, %arg4: memref<8x32xf32, #tpu.memory_space<vmem>>) attributes {dimension_semantics = [#tpu.dimension_semantics<arbitrary>], iteration_bounds = array<i64: 1>, scalar_prefetch = 0 : i64, scratch_operands = 1 : i64, tpu.core_type = #tpu.core_type<tc>, window_params = [{transform_indices = @transform_0, window_bounds = array<i64: 16, 32>}, {transform_indices = @transform_1, window_bounds = array<i64: 16, 1>}, {pipeline_mode = #tpu.pipeline_mode<synchronous>, transform_indices = @transform_2, window_bounds = array<i64: 1, 1>}]} {
    %c0_i32 = arith.constant 0 : i32
    %0 = arith.cmpi eq, %arg0, %c0_i32 : i32
    %1 = arith.extui %0 : i1 to i32
    %c0_i32_0 = arith.constant 0 : i32
    %2 = arith.cmpi ne, %1, %c0_i32_0 : i32
    scf.if %2 {
      %cst_15 = arith.constant 0.000000e+00 : f32
      %33 = vector.broadcast %cst_15 : f32 to vector<8x32xf32>
      %c0_16 = arith.constant 0 : index
      %c0_17 = arith.constant 0 : index
      %34 = vector.load %arg4[%c0_16, %c0_17] : memref<8x32xf32, #tpu.memory_space<vmem>>, vector<8x32xf32>
      tpu.vector_store %arg4[%c0_16, %c0_17], %33 {strides = array<i32>} : memref<8x32xf32, #tpu.memory_space<vmem>>, vector<8x32xf32>,
    } else {
    }
    %c0 = arith.constant 0 : index
    %c0_1 = arith.constant 0 : index
    %3 = vector.load %arg1[%c0, %c0_1] : memref<16x32xf32, #tpu.memory_space<vmem>>, vector<16x32xf32>
    %c0_2 = arith.constant 0 : index
    %c0_3 = arith.constant 0 : index
    %4 = vector.load %arg2[%c0_2, %c0_3] : memref<16x1xi32, #tpu.memory_space<vmem>>, vector<16x1xi32>
    %5 = tpu.iota {dimensions = array<i32: 1>} : vector<16x32xi32>
    %6 = vector.broadcast %4 : vector<16x1xi32> to vector<16x32xi32>
    %7 = arith.cmpi eq, %5, %6 : vector<16x32xi32>
    %cst = arith.constant 0.899999976 : f32
    %cst_4 = arith.constant 0.00333333341 : f32
    %8 = vector.broadcast %cst : f32 to vector<16x32xf32>
    %9 = vector.broadcast %cst_4 : f32 to vector<16x32xf32>
    %10 = arith.select %7, %8, %9 : vector<16x32xi1>, vector<16x32xf32>
    %c0_i32_5 = arith.constant 0 : i32
    %11 = vector.broadcast %c0_i32_5 : i32 to vector<16x32xi32>
    %12 = arith.cmpi eq, %5, %11 : vector<16x32xi32>
    %cst_6 = arith.constant 0.000000e+00 : f32
    %13 = vector.broadcast %cst_6 : f32 to vector<16x32xf32>
    %14 = arith.select %12, %13, %10 : vector<16x32xi1>, vector<16x32xf32>
    %c0_i32_7 = arith.constant 0 : i32
    %15 = vector.broadcast %c0_i32_7 : i32 to vector<16x1xi32>
    %16 = arith.cmpi ne, %4, %15 : vector<16x1xi32>
    %17 = arith.extui %16 : vector<16x1xi1> to vector<16x1xi32>
    %18 = arith.sitofp %17 : vector<16x1xi32> to vector<16x1xf32>
    %19 = arith.mulf %14, %3 : vector<16x32xf32>
    %cst_8 = arith.constant -0.0207875855 : f32
    %20 = vector.broadcast %cst_8 : f32 to vector<16x32xf32>
    %21 = arith.subf %20, %19 : vector<16x32xf32>
    %22 = vector.broadcast %18 : vector<16x1xf32> to vector<16x32xf32>
    %23 = arith.mulf %22, %21 : vector<16x32xf32>
    %c0_9 = arith.constant 0 : index
    %c0_10 = arith.constant 0 : index
    %24 = vector.load %arg4[%c0_9, %c0_10] : memref<8x32xf32, #tpu.memory_space<vmem>>, vector<8x32xf32>
    %25 = vector.extract_strided_slice %23 {offsets = [0, 0], sizes = [8, 32], strides = [1, 1]} : vector<16x32xf32> to vector<8x32xf32>
    %26 = arith.addf %24, %25 : vector<8x32xf32>
    %27 = vector.extract_strided_slice %23 {offsets = [8, 0], sizes = [8, 32], strides = [1, 1]} : vector<16x32xf32> to vector<8x32xf32>
    %28 = arith.addf %26, %27 : vector<8x32xf32>
    %c0_11 = arith.constant 0 : index
    %c0_12 = arith.constant 0 : index
    %29 = vector.load %arg4[%c0_11, %c0_12] : memref<8x32xf32, #tpu.memory_space<vmem>>, vector<8x32xf32>
    tpu.vector_store %arg4[%c0_11, %c0_12], %28 {strides = array<i32>} : memref<8x32xf32, #tpu.memory_space<vmem>>, vector<8x32xf32>,
    %c0_i32_13 = arith.constant 0 : i32
    %30 = arith.cmpi eq, %arg0, %c0_i32_13 : i32
    %31 = arith.extui %30 : i1 to i32
    %c0_i32_14 = arith.constant 0 : i32
    %32 = arith.cmpi ne, %31, %c0_i32_14 : i32
    scf.if %32 {
      %c0_15 = arith.constant 0 : index
      %c0_16 = arith.constant 0 : index
      %33 = vector.load %arg4[%c0_15, %c0_16] : memref<8x32xf32, #tpu.memory_space<vmem>>, vector<8x32xf32>
      %cst_17 = arith.constant dense<0.000000e+00> : vector<32xf32>
      %34 = vector.multi_reduction <add>, %33, %cst_17 [0] : vector<8x32xf32> to vector<32xf32>
      %35 = vector.shape_cast %34 : vector<32xf32> to vector<1x32xf32>
      %cst_18 = arith.constant dense<0.000000e+00> : vector<1xf32>
      %36 = vector.multi_reduction <add>, %35, %cst_18 [1] : vector<1x32xf32> to vector<1xf32>
      %37 = vector.shape_cast %36 : vector<1xf32> to vector<1x1xf32>
      %c0_19 = arith.constant 0 : index
      %c0_20 = arith.constant 0 : index
      %38 = vector.load %arg3[%c0_19, %c0_20] : memref<1x1xf32, #tpu.memory_space<vmem>>, vector<1x1xf32>
      tpu.vector_store %arg3[%c0_19, %c0_20], %37 {strides = array<i32>} : memref<1x1xf32, #tpu.memory_space<vmem>>, vector<1x1xf32>,
    } else {
    }
    return
  }
  func.func @transform_0(%arg0: i32) -> (i32, i32) {
    %c0_i32 = arith.constant 0 : i32
    %c0_i32_0 = arith.constant 0 : i32
    return %arg0, %c0_i32 : i32, i32
  }
  func.func @transform_1(%arg0: i32) -> (i32, i32) {
    %c0_i32 = arith.constant 0 : i32
    %c0_i32_0 = arith.constant 0 : i32
    return %arg0, %c0_i32 : i32, i32
  }
  func.func @transform_2(%arg0: i32) -> (i32, i32) {
    %c0_i32 = arith.constant 0 : i32
    %c0_i32_0 = arith.constant 0 : i32
    %c0_i32_1 = arith.constant 0 : i32
    return %c0_i32, %c0_i32_0 : i32, i32
  }
}

</mosaic_0001>

<llo_original>
// kernel: tpu_custom_call.1
$region0: #{tpu_custom_call.1}
  #allocation0 [shape = 'u32[]', space=smem, size = 0x4, offset = 0x4, fixed_abs, tag = 'smem constant byte address 0x4 - core index']
  #allocation1 [shape = 'u32[144,128]{1,0:T(1,128)}', space=vmem, size = 0x12000, scoped, tag = 'internal scratch']
  #allocation2 [shape = 'f32[8,32]{1,0:T(8,128)}', space=vmem, size = 0x1000, scoped, tag = 'scratch operand']
  %s0 = inlined_call_operand.vmem [shape: f32[16,32], index: 0, kind: input, shape index: {}]
  %s1 = inlined_call_operand.vmem [shape: s32[16,1], index: 1, kind: input, shape index: {}]
  %s2 = inlined_call_operand.hbm [shape: f32[1,1], index: 2, kind: output, shape index: {}]
  %s3 = sld [smem:[#allocation0]]
  $region26: #{tpu_custom_call.1} parent=0
    _
  %s5 = ssub.s32 1, %s3
  %s6 = scalar_select 0, %s5, %s3
  $region1: #{tpu_custom_call.1} parent=0
    #allocation3 [shape = 'u8[512]{0}', space=vmem, size = 0x400, scoped, tag = 'output window, operand 0, single buffered']
    #allocation4 [shape = 's32[1]{0}', space=sflag, size = 0x4, scoped, tag = 'scoped memory for tpu_custom_call.1']
    %7 = vsyncpa [#allocation4], 0
    // Predicated region
    $region2: #{tpu_custom_call.1} parent=1 // pred_check
      _
    $region3: #{tpu_custom_call.1} parent=1 // pred_check_branch
      %9 = sbr.rel (0) target = $region5
    $region4: #{tpu_custom_call.1} parent=1 // pred_region
      _
    $region5: #{tpu_custom_call.1} parent=1 // pred_fallthru
      _
    // Predicated region
    $region6: #{tpu_custom_call.1} parent=1 // pred_check
      _
    $region7: #{tpu_custom_call.1} parent=1 // pred_check_branch
      %11 = sbr.rel (0) target = $region9
    $region8: #{tpu_custom_call.1} parent=1 // pred_region
      _
    $region9: #{tpu_custom_call.1} parent=1 // pred_fallthru
      _
    %p12 = scmp.eq.s32.totalorder 0, 0
    // Predicated region
    $region10: #{tpu_custom_call.1} parent=1 // pred_check
      %p13 = pneg %p12
    $region11: #{tpu_custom_call.1} parent=1 // pred_check_branch
      %15 = sbr.rel (%p13) target = $region13
    $region12: #{tpu_custom_call.1} parent=1 // pred_region
      %vm16 = vcmask 261120
      %17 = vst.msk [vmem:[#allocation2] sm:$0xff] %vm16, 0.0
    $region13: #{tpu_custom_call.1} parent=1 // pred_fallthru
      _
    %v18 = vld [vmem:[%s0] sm:$0xff]
    %v19 = vld [vmem:[%s0 + $0x8] sm:$0xff]
    %v20 = vld [vmem:[%s1] sm:$0xff]
    %v21 = vld [vmem:[%s1 + $0x8] sm:$0xff]
    %v22 = vlaneseq
    %v23 = vand.u32 %v22, 127
    %24 = vset.pattern.permute.xlu0 0
    %25 = vperm.xlu0 %24, %v20
    %v26 = vpop.permute.xlu0 %25
    %27 = vset.pattern.permute.xlu0 0
    %28 = vperm.xlu0 %27, %v21
    %v29 = vpop.permute.xlu0 %28
    %vm30 = vcmp.eq.s32.totalorder %v23, %v26
    %vm31 = vcmp.eq.s32.totalorder %v23, %v29
    %v32 = vsel %vm30, 0.9, 0.0033333334
    %v33 = vsel %vm31, 0.9, 0.0033333334
    %vm34 = vcmp.eq.s32.totalorder %v23, 0
    %v35 = vsel %vm34, 0.0, %v32
    %v36 = vsel %vm34, 0.0, %v33
    %vm37 = vcmp.ne.s32.totalorder %v20, 0
    %vm38 = vcmp.ne.s32.totalorder %v21, 0
    %v39 = vsel %vm37, 1, 0
    %v40 = vsel %vm38, 1, 0
    %v41 = vcvt.s32.f32 %v39
    %v42 = vcvt.s32.f32 %v40
    %v43 = vmul.f32 %v35, %v18
    %v44 = vmul.f32 %v36, %v19
    %v45 = vsub.f32 -0.020787586, %v43
    %v46 = vsub.f32 -0.020787586, %v44
    %48 = vset.pattern.permute.xlu0 0
    %49 = vperm.xlu0 %48, %v41
    %v50 = vpop.permute.xlu0 %49
    %53 = vset.pattern.permute.xlu0 0
    %54 = vperm.xlu0 %53, %v42
    %v55 = vpop.permute.xlu0 %54
    %v57 = vmul.f32 %v50, %v45
    %v58 = vmul.f32 %v55, %v46
    %v59 = vld [vmem:[#allocation2] sm:$0xff]
    %v60 = vadd.f32 %v59, %v57
    %v61 = vadd.f32 %v60, %v58
    %vm62 = vcmask 261120
    %63 = vst.msk [vmem:[#allocation2] sm:$0xff] %vm62, %v61
    // Predicated region
    $region14: #{tpu_custom_call.1} parent=1 // pred_check
      %p64 = pneg %p12
    $region15: #{tpu_custom_call.1} parent=1 // pred_check_branch
      %66 = sbr.rel (%p64) target = $region17
    $region16: #{tpu_custom_call.1} parent=1 // pred_region
      %v67 = vld [vmem:[#allocation2] sm:$0xff]
      %v68 = vsel %vm62, %v67, 0.0
      %v69 = vrot.slane %v68, 4
      %v70 = vadd.f32 %v68, %v69
      %v71 = vrot.slane %v70, 2
      %v72 = vadd.f32 %v70, %v71
      %v73 = vrot.slane %v72, 1
      %v74 = vadd.f32 %v72, %v73
      %v75 = vsel %vm62, %v74, 0.0
      %76 = vadd.xlane.f32.xlu0 %v75
      %v77 = vpop.xlane.xlu0 %76
      %vm78 = vcmask 0
      %79 = vst.msk [vmem:[#allocation3] sm:$0x1] %vm78, %v77
    $region17: #{tpu_custom_call.1} parent=1 // pred_fallthru
      _
    // Predicated region
    $region18: #{tpu_custom_call.1} parent=1 // pred_check
      _
    $region19: #{tpu_custom_call.1} parent=1 // pred_check_branch
      %81 = sbr.rel (0) target = $region21
    $region20: #{tpu_custom_call.1} parent=1 // pred_region
      %s83 = ssub.s32 16, 16
      %84 = vsyncadd [#allocation4], %s83
      %s86 = sshll.u32 [#allocation3], 4
      %s87 = int_to_ptr.vmem [resolvable:$true] %s86
      %89 = dma.vmem_to_hbm [thread:$0]  %s87, 16, %s2, [#allocation4]
    $region21: #{tpu_custom_call.1} parent=1 // pred_fallthru
      _
    // Predicated region
    $region22: #{tpu_custom_call.1} parent=1 // pred_check
      _
    $region23: #{tpu_custom_call.1} parent=1 // pred_check_branch
      %91 = sbr.rel (0) target = $region25
    $region24: #{tpu_custom_call.1} parent=1 // pred_region
      %92 = dma.done [#allocation4], 16
    $region25: #{tpu_custom_call.1} parent=1 // pred_fallthru
      _
    %93 = vsyncpa [#allocation4], 1

</llo_original>
